<compile_context>
chip_gen: v6e
topology: v6e:2x2x1
jax: 0.10.0
libtpu: 0.0.40
codegen_flags: <defaults>
</compile_context>

<pallas_src>
import functools

import jax
import jax.numpy as jnp
from jax.experimental import pallas as pl
from jax.experimental.pallas import tpu as pltpu


def _dwconv1d_kernel(x_ref, w_ref, o_ref, xscr_ref, *,
                     pad_left, kernel_size, stride, store_len):
    # x_ref : (1, ct_in, L)            unpadded input block, channels on sublanes
    # w_ref : (1, ct_out, K*ct_in)     fused taps-x-expansion weights (resident)
    # o_ref : (1, ct_out, store_len)   output block (lane-dense store width)
    # xscr  : (ct_in, scratch_len) f32 persistent zero-framed staging scratch
    K = kernel_size
    p = pad_left
    ct_in = x_ref.shape[1]
    L = x_ref.shape[2]
    Lx = xscr_ref.shape[1]

    # ---- fused cast + zero padding ------------------------------------------
    # One store of the (small, unexpanded) input into a zero-framed scratch.
    # Pad columns are re-zeroed every step (cheap) instead of only on grid step
    # 0, so the kernel stays correct when the parallel grid is split across
    # TensorCores (each core owns a private scratch and may never see step 0).
    if p > 0:
        xscr_ref[:, pl.ds(0, p)] = jnp.zeros((ct_in, p), jnp.float32)
    if Lx > p + L:
        xscr_ref[:, pl.ds(p + L, Lx - p - L)] = jnp.zeros(
            (ct_in, Lx - p - L), jnp.float32)
    xscr_ref[:, pl.ds(p, L)] = x_ref[0].astype(jnp.float32)

    # ---- gather the K tap windows on the UNEXPANDED input --------------------
    # stride == 1: plain shifted windows; stride > 1: lane-strided reads so only
    # the subsampled output ever leaves VMEM.
    windows = []
    for k in range(K):                                   # K is small and static
        if stride == 1:
            windows.append(xscr_ref[:, pl.ds(k, store_len)])
        else:
            windows.append(xscr_ref[:, pl.ds(k, store_len, stride=stride)])
    xstack = jnp.concatenate(windows, axis=0)            # (K*ct_in, store_len)

    # ---- fused taps + grouped-channel expansion on the MXU -------------------
    # W_fused[co, k*ct_in + ci] = w[co, k] * (ci == co // M): one matmul does
    # all MACs and the channel expansion; VPU / store slots stay free for the
    # memory path of this memory-bound kernel.
    y = jnp.dot(w_ref[0], xstack,
                preferred_element_type=jnp.float32,
                precision=jax.lax.Precision.HIGHEST)
    o_ref[0] = y.astype(o_ref.dtype)


def _vmem_capacity_bytes():
    """Physical VMEM of the attached TPU generation (conservative fallback)."""
    try:
        cap = int(pltpu.get_tpu_info().vmem_capacity_bytes)
        if cap > 0:
            return cap
    except Exception:
        pass
    return 64 * 1024 * 1024      # v7x-safe lower bound (v5e / v6e have 128 MiB)


def _pick_channel_block(cin, mult, length, ksize, store_len, scratch_len,
                        itemsize, budget_bytes):
    """Largest channel block (divisor of cin; multiple of 8, or cin itself)
    whose honest per-step VMEM working set fits the generation-aware budget."""
    def step_bytes(ct_in):
        ct_out = ct_in * mult
        b = (2 * ct_in * length * itemsize           # double-buffered input tile
             + 2 * ct_out * ksize * ct_in * 4        # fused-weight tile (pipelined)
             + 2 * ct_out * store_len * itemsize     # double-buffered output tile
             + ct_in * scratch_len * 4               # persistent padded scratch
             + 2 * ksize * ct_in * store_len * 4     # K windows + stacked copy
             + ct_out * store_len * 4)               # f32 MXU result before cast
        return int(b * 1.25)                         # headroom for relayout temps

    cands = sorted({cin} | {d for d in range(8, cin, 8) if cin % d == 0},
                   reverse=True)
    for ct in cands:
        if step_bytes(ct) <= budget_bytes:
            return ct
    # TODO(synk): for very long L with tiny Cin even the smallest block can
    # exceed the budget; length-axis tiling with K-1 halos is the proper fix.
    return cands[-1]


def _build_fused_weight(weight, cin, mult, ct_in):
    """(Cout, 1, K) torch-layout weights -> per-channel-block fused matrices.

    fused[c, co, k*ct_in + ci] = weight[c*ct_out + co, 0, k] * (ci == co // mult)
    so a single matmul against the stacked tap windows performs both the K-tap
    convolution and the grouped-channel expansion co -> co // mult.
    """
    cout, _, K = weight.shape
    ct_out = ct_in * mult
    n_cblk = cin // ct_in
    w2d = weight[:, 0, :].astype(jnp.float32)                    # (Cout, K)
    sel = (jnp.arange(ct_out)[:, None] // mult
           == jnp.arange(ct_in)[None, :]).astype(jnp.float32)    # (ct_out, ct_in)
    wb = w2d.reshape(n_cblk, ct_out, K)
    fused = wb[:, :, :, None] * sel[None, :, None, :]            # (n, co, K, ci)
    return fused.reshape(n_cblk, ct_out, K * ct_in)


def _dwconv1d_pallas(x, weight, *, stride, padding):
    B, Cin, L = x.shape
    Cout, _, K = weight.shape
    assert Cout % Cin == 0
    M = Cout // Cin
    Lpad = L + 2 * padding
    assert Lpad >= K, "kernel does not fit even with padding"
    Lout = (Lpad - K) // stride + 1

    # Lane-dense store width: pad tiny outputs up to one full vreg row (avoids
    # masked vst.msk stores / poor DMA granularity; tail sliced off below).
    # Large outputs keep exact width: only the last partial vreg is masked and a
    # wrapper-side slice would cost a full extra HBM pass over the output.
    store_len = 128 if Lout < 128 else Lout
    scratch_len = max(Lpad, (store_len - 1) * stride + K)

    cap = _vmem_capacity_bytes()
    budget = int(0.40 * cap)
    vmem_limit = min(int(0.75 * cap), 100 * 1024 * 1024)

    ct_in = _pick_channel_block(Cin, M, L, K, store_len, scratch_len,
                                x.dtype.itemsize, budget)
    # v7x has two TensorCores: guarantee at least two parallel grid steps.
    if B * (Cin // ct_in) < 2:
        splits = [d for d in range(8, Cin // 2 + 1, 8) if Cin % d == 0]
        if splits:
            ct_in = max(splits)
        # else: TODO(synk): length-axis tiling would provide the extra steps.
    n_cblk = Cin // ct_in
    ct_out = ct_in * M

    w_fused = _build_fused_weight(weight, Cin, M, ct_in)

    kernel = functools.partial(
        _dwconv1d_kernel, pad_left=padding, kernel_size=K, stride=stride,
        store_len=store_len)

    flops = 2 * B * Cout * store_len * K * ct_in
    bytes_accessed = (x.size * x.dtype.itemsize
                      + B * Cout * store_len * x.dtype.itemsize
                      + w_fused.size * 4)

    out = pl.pallas_call(
        kernel,
        out_shape=jax.ShapeDtypeStruct((B, Cout, store_len), x.dtype),
        grid_spec=pltpu.PrefetchScalarGridSpec(
            num_scalar_prefetch=0,
            # Batch innermost so the fused-weight block (index depends only on
            # the channel axis) stays resident across batch steps.
            grid=(n_cblk, B),
            in_specs=[
                pl.BlockSpec((1, ct_in, L), lambda c, b: (b, c, 0)),
                pl.BlockSpec((1, ct_out, K * ct_in), lambda c, b: (c, 0, 0)),
            ],
            out_specs=pl.BlockSpec((1, ct_out, store_len),
                                   lambda c, b: (b, c, 0)),
            scratch_shapes=[pltpu.VMEM((ct_in, scratch_len), jnp.float32)],
        ),
        compiler_params=pltpu.CompilerParams(
            dimension_semantics=("parallel", "parallel"),
            vmem_limit_bytes=vmem_limit,
        ),
        cost_estimate=pl.CostEstimate(
            flops=flops, transcendentals=0, bytes_accessed=bytes_accessed),
    )(x, w_fused)

    if store_len != Lout:
        out = out[:, :, :Lout]
    return out


def depthwise_conv1d(x, weight, *, stride=1, padding=0):
    """x: (B, Cin, L), weight: (Cout, 1, K) with Cout % Cin == 0 -> (B, Cout, Lout)."""
    B, Cin, L = x.shape
    Cout, _, K = weight.shape
    Lpad = L + 2 * padding
    Lout = (Lpad - K) // stride + 1

    if stride == 1:
        return _dwconv1d_pallas(x, weight, stride=1, padding=padding)

    # stride > 1: strided in-kernel window reads write only the Lout subsampled
    # columns to HBM (the dense-output + XLA-slice path moves ~stride x more).
    try:
        out = _dwconv1d_pallas(x, weight, stride=stride, padding=padding)
        return jax.block_until_ready(out)
    except Exception:
        # TODO(synk): drop this fallback once ref[pl.ds(..., stride=s)] lane
        # reads are confirmed to lower on all TPU generations.
        dense = _dwconv1d_pallas(x, weight, stride=1, padding=padding)
        return dense[:, :, ::stride][:, :, :Lout]


def _reference(x, weight, *, stride, padding, groups):
    # Pure-JAX reference with PyTorch Conv1d semantics (NCW / OIW).
    return jax.lax.conv_general_dilated(
        x, weight,
        window_strides=(stride,),
        padding=[(padding, padding)],
        dimension_numbers=("NCH", "OIH", "NCH"),
        feature_group_count=groups,
        precision=jax.lax.Precision.HIGHEST,
    )


def _check(x, weight, *, stride, padding, groups):
    out = depthwise_conv1d(x, weight, stride=stride, padding=padding)
    out = jax.block_until_ready(out)
    ref = _reference(x, weight, stride=stride, padding=padding, groups=groups)
    assert out.shape == ref.shape, (out.shape, ref.shape)
    assert jnp.allclose(out, ref, atol=1e-4, rtol=1e-4), (
        "mismatch vs reference", float(jnp.max(jnp.abs(out - ref))))


if __name__ == "__main__":
    key = jax.random.PRNGKey(0)
    kx, kw, kx2, kw2, kx3, kw3 = jax.random.split(key, 6)

    # Module config: DepthwiseConv1d(in_channels=4, out_channels=8,
    #                                kernel_size=3, stride=1, padding=1)
    B, Cin, L = 2, 4, 16
    Cout, K = 8, 3
    x = jax.random.normal(kx, (B, Cin, L), dtype=jnp.float32)
    w = jax.random.normal(kw, (Cout, 1, K), dtype=jnp.float32) * 0.1

    # 1) depth-multiplier M=2, padding=1, stride=1 (the given config)
    _check(x, w, stride=1, padding=1, groups=Cin)
    # 2) strided config: stride=2, padding=1
    _check(x, w, stride=2, padding=1, groups=Cin)

    # 3) classic depthwise (M=1), no padding
    x2 = jax.random.normal(kx2, (B, 8, 16), dtype=jnp.float32)
    w2 = jax.random.normal(kw2, (8, 1, K), dtype=jnp.float32) * 0.1
    _check(x2, w2, stride=1, padding=0, groups=8)

    # 4) moderate shape: exercises >=128-lane stores, K=5, M=2, both strides
    x3 = jax.random.normal(kx3, (2, 16, 256), dtype=jnp.float32)
    w3 = jax.random.normal(kw3, (32, 1, 5), dtype=jnp.float32) * 0.1
    _check(x3, w3, stride=1, padding=2, groups=16)
    _check(x3, w3, stride=2, padding=2, groups=16)

    print("KERNEL_OK")
</pallas_src>

<mosaic_0001>
module attributes {stable_mosaic.version = 11 : i64} {
  func.func @_dwconv1d_kernel(%arg0: i32, %arg1: i32, %arg2: memref<1x4x16xf32, #tpu.memory_space<vmem>>, %arg3: memref<1x8x12xf32, #tpu.memory_space<vmem>>, %arg4: memref<1x8x128xf32, #tpu.memory_space<vmem>>, %arg5: memref<4x130xf32, #tpu.memory_space<vmem>>) attributes {dimension_semantics = [#tpu.dimension_semantics<parallel>, #tpu.dimension_semantics<parallel>], iteration_bounds = array<i64: 1, 2>, scalar_prefetch = 0 : i64, scratch_operands = 1 : i64, tpu.core_type = #tpu.core_type<tc>, window_params = [{transform_indices = @transform_0, window_bounds = array<i64: 1, 4, 16>}, {transform_indices = @transform_1, window_bounds = array<i64: 1, 8, 12>}, {transform_indices = @transform_2, window_bounds = array<i64: 1, 8, 128>}]} {
    %cst = arith.constant 0.000000e+00 : f32
    %0 = vector.broadcast %cst : f32 to vector<4x1xf32>
    %c0 = arith.constant 0 : index
    %c0_0 = arith.constant 0 : index
    %1 = vector.load %arg5[%c0, %c0_0] : memref<4x130xf32, #tpu.memory_space<vmem>>, vector<4x1xf32>
    tpu.vector_store %arg5[%c0, %c0_0], %0 {strides = array<i32>} : memref<4x130xf32, #tpu.memory_space<vmem>>, vector<4x1xf32>,
    %cst_1 = arith.constant 0.000000e+00 : f32
    %2 = vector.broadcast %cst_1 : f32 to vector<4x113xf32>
    %c0_2 = arith.constant 0 : index
    %c17 = arith.constant 17 : index
    %3 = vector.load %arg5[%c0_2, %c17] : memref<4x130xf32, #tpu.memory_space<vmem>>, vector<4x113xf32>
    tpu.vector_store %arg5[%c0_2, %c17], %2 {strides = array<i32>} : memref<4x130xf32, #tpu.memory_space<vmem>>, vector<4x113xf32>,
    %c0_3 = arith.constant 0 : index
    %c0_4 = arith.constant 0 : index
    %c0_5 = arith.constant 0 : index
    %4 = vector.load %arg2[%c0_3, %c0_4, %c0_5] : memref<1x4x16xf32, #tpu.memory_space<vmem>>, vector<1x4x16xf32>
    %5 = vector.shape_cast %4 : vector<1x4x16xf32> to vector<4x16xf32>
    %c0_6 = arith.constant 0 : index
    %c1 = arith.constant 1 : index
    %6 = vector.load %arg5[%c0_6, %c1] : memref<4x130xf32, #tpu.memory_space<vmem>>, vector<4x16xf32>
    tpu.vector_store %arg5[%c0_6, %c1], %5 {strides = array<i32>} : memref<4x130xf32, #tpu.memory_space<vmem>>, vector<4x16xf32>,
    %c0_7 = arith.constant 0 : index
    %c0_8 = arith.constant 0 : index
    %7 = vector.load %arg5[%c0_7, %c0_8] : memref<4x130xf32, #tpu.memory_space<vmem>>, vector<4x128xf32>
    %c0_9 = arith.constant 0 : index
    %c1_10 = arith.constant 1 : index
    %8 = vector.load %arg5[%c0_9, %c1_10] : memref<4x130xf32, #tpu.memory_space<vmem>>, vector<4x128xf32>
    %c0_11 = arith.constant 0 : index
    %c2 = arith.constant 2 : index
    %9 = vector.load %arg5[%c0_11, %c2] : memref<4x130xf32, #tpu.memory_space<vmem>>, vector<4x128xf32>
    %10 = tpu.concatenate %7, %8, %9 in 0 : vector<4x128xf32>, vector<4x128xf32>, vector<4x128xf32> -> vector<12x128xf32>
    %c0_12 = arith.constant 0 : index
    %c0_13 = arith.constant 0 : index
    %c0_14 = arith.constant 0 : index
    %11 = vector.load %arg3[%c0_12, %c0_13, %c0_14] : memref<1x8x12xf32, #tpu.memory_space<vmem>>, vector<1x8x12xf32>
    %12 = vector.shape_cast %11 : vector<1x8x12xf32> to vector<8x12xf32>
    %cst_15 = arith.constant dense<0.000000e+00> : vector<8x128xf32>
    %13 = tpu.matmul %12, %10, %cst_15 {dimension_numbers = #tpu.dot_dimension_numbers<[1], [0], [0], [1], [0, 0, 1, 1], [], []>, precision = #tpu.contract_precision<fp32>} : vector<8x12xf32>, vector<12x128xf32>, vector<8x128xf32> -> vector<8x128xf32>
    %c0_16 = arith.constant 0 : index
    %c0_17 = arith.constant 0 : index
    %c0_18 = arith.constant 0 : index
    %14 = vector.load %arg4[%c0_16, %c0_17, %c0_18] : memref<1x8x128xf32, #tpu.memory_space<vmem>>, vector<1x8x128xf32>
    %15 = vector.shape_cast %14 : vector<1x8x128xf32> to vector<8x128xf32>
    %16 = vector.shape_cast %13 : vector<8x128xf32> to vector<1x8x128xf32>
    tpu.vector_store %arg4[%c0_16, %c0_17, %c0_18], %16 {strides = array<i32>} : memref<1x8x128xf32, #tpu.memory_space<vmem>>, vector<1x8x128xf32>,
    return
  }
  func.func @transform_0(%arg0: i32, %arg1: i32) -> (i32, i32, i32) {
    %c0_i32 = arith.constant 0 : i32
    %c0_i32_0 = arith.constant 0 : i32
    return %arg1, %arg0, %c0_i32 : i32, i32, i32
  }
  func.func @transform_1(%arg0: i32, %arg1: i32) -> (i32, i32, i32) {
    %c0_i32 = arith.constant 0 : i32
    %c0_i32_0 = arith.constant 0 : i32
    %c0_i32_1 = arith.constant 0 : i32
    return %arg0, %c0_i32, %c0_i32_0 : i32, i32, i32
  }
  func.func @transform_2(%arg0: i32, %arg1: i32) -> (i32, i32, i32) {
    %c0_i32 = arith.constant 0 : i32
    %c0_i32_0 = arith.constant 0 : i32
    return %arg1, %arg0, %c0_i32 : i32, i32, i32
  }
}

</mosaic_0001>

<llo_original>
// kernel: tpu_custom_call.1
$region0: #{tpu_custom_call.1}
  #allocation0 [shape = 'u32[]', space=smem, size = 0x4, offset = 0x4, fixed_abs, tag = 'smem constant byte address 0x4 - core index']
  #allocation1 [shape = 'u32[144,128]{1,0:T(1,128)}', space=vmem, size = 0x12000, scoped, tag = 'internal scratch']
  #allocation2 [shape = 'f32[4,130]{1,0:T(4,128)}', space=vmem, size = 0x1000, scoped, tag = 'scratch operand']
  %s0 = inlined_call_operand.hbm [shape: f32[2,4,16], index: 0, kind: input, shape index: {}]
  %s1 = inlined_call_operand.hbm [shape: f32[1,8,12], index: 1, kind: input, shape index: {}]
  %s2 = inlined_call_operand.hbm [shape: f32[2,8,128], index: 2, kind: output, shape index: {}]
  %s3 = sld [smem:[#allocation0]]
  $region49: #{tpu_custom_call.1} parent=0
    _
  %s5 = ssub.s32 1, %s3
  %s6 = scalar_select 0, %s5, %s3
  $region1: #{tpu_custom_call.1} parent=0
    #allocation3 [shape = 'u8[4096]{0}', space=vmem, size = 0x1000, scoped, tag = 'input window, operand 0']
    #allocation4 [shape = 's32[2]{0}', space=sflag, size = 0x8, scoped, tag = 'scoped memory for tpu_custom_call.1']
    #allocation5 [shape = 's32[2]{0}', space=sflag, size = 0x8, scoped, tag = 'scoped memory for tpu_custom_call.1']
    #allocation6 [shape = 'u8[4096]{0}', space=vmem, size = 0x1000, scoped, tag = 'input window, operand 1, single buffered']
    #allocation7 [shape = 's32[1]{0}', space=sflag, size = 0x4, scoped, tag = 'scoped memory for tpu_custom_call.1']
    #allocation8 [shape = 'u8[8192]{0}', space=vmem, size = 0x2000, scoped, tag = 'output window, operand 0']
    %7 = vsyncpa [#allocation4], 0
    %s8 = scalar_lea.sflag [#allocation4], 1
    %9 = vsyncpa %s8, 0
    %10 = vsyncpa [#allocation7], 0
    %11 = vsyncpa [#allocation5], 0
    %s12 = scalar_lea.sflag [#allocation5], 1
    %13 = vsyncpa %s12, 0
    loop: start=0, step=1, limit=4
    $region2: #{tpu_custom_call.1} parent=1 // loop_pre_header
      _
    $region3: #{tpu_custom_call.1} parent=1 // loop_header
      %s15 = sphi 0, %s19
      %p16 = scmp.ge.s32.totalorder %s15, 4
      %s22 = sphi 0, %s34
      %s23 = sphi 0, %s30
      %s24 = sphi 0, %s22
      %s25 = sphi 0, %s23
      %s26 = sphi 0, %s24
      %s27 = sphi 0, %s25
      %s39 = sphi 0, %s41
      %s42 = sphi 0, %s39
      %s43 = sphi 0, %s42
      %s59 = sphi 0, %s43
      %s65 = sphi 0, %s67
      %s68 = sphi 0, %s65
      %s69 = sphi 0, %s68
      %s85 = sphi 0, %s69
      %s93 = sphi 0, %s95
      %s96 = sphi 0, %s93
      %s97 = sphi 0, %s96
      %s113 = sphi 0, %s97
    $region4: #{tpu_custom_call.1} parent=1 // loop_header_branch
      %18 = sbr.rel (%p16) target = $region8
    $region5: #{tpu_custom_call.1} parent=1 // loop_body
      %s20 = ssub.s32 %s15, 1
      %s21 = ssub.s32 %s15, 2
      %s28 = sadd.s32 1, %s23
      %p29 = scmp.ge.s32.totalorder %s28, 2
      %s30 = scalar_select %p29, 0, %s28
      %s31 = sadd.s32 1, %s22
      %s32 = scalar_select %p29, %s31, %s22
      %p33 = scmp.ge.s32.totalorder %s32, 1
      %s34 = scalar_select %p33, 0, %s32
      %s35 = ssub.s32 %s23, %s30
      %s36 = ssub.s32 %s22, %s34
      %s37 = sor.u32 %s35, %s36
      %p38 = scmp.eq.s32.totalorder %s37, 0
      %s40 = sadd.s32 %s39, 1
      %s41 = scalar_select %p38, %s39, %s40
      %p44 = pneg %p38
      %p45 = scmp.eq.s32.totalorder %s15, 1
      %p46 = por %p44, %p45
      %p47 = scmp.ne.s32.totalorder %s39, %s42
      %p48 = scmp.eq.s32.totalorder %s15, 0
      %p49 = por %p47, %p48
      %p50 = scmp.ne.s32.totalorder %s39, %s42
      %p51 = scmp.eq.s32.totalorder %s20, 1
      %p52 = por %p50, %p51
      %p53 = scmp.ne.s32.totalorder %s42, %s43
      %p54 = scmp.eq.s32.totalorder %s20, 0
      %p55 = por %p53, %p54
      %p56 = scmp.ne.s32.totalorder %s42, %s43
      %p57 = scmp.eq.s32.totalorder %s21, 1
      %p58 = por %p56, %p57
      %p60 = scmp.ne.s32.totalorder %s43, %s59
      %p61 = scmp.eq.s32.totalorder %s21, 0
      %p62 = por %p60, %p61
      %s63 = ssub.s32 %s22, %s34
      %p64 = scmp.eq.s32.totalorder %s63, 0
      %s66 = sadd.s32 %s65, 1
      %s67 = scalar_select %p64, %s65, %s66
      %p70 = pneg %p64
      %p71 = scmp.eq.s32.totalorder %s15, 1
      %p72 = por %p70, %p71
      %p73 = scmp.ne.s32.totalorder %s65, %s68
      %p74 = scmp.eq.s32.totalorder %s15, 0
      %p75 = por %p73, %p74
      %p76 = scmp.ne.s32.totalorder %s65, %s68
      %p77 = scmp.eq.s32.totalorder %s20, 1
      %p78 = por %p76, %p77
      %p79 = scmp.ne.s32.totalorder %s68, %s69
      %p80 = scmp.eq.s32.totalorder %s20, 0
      %p81 = por %p79, %p80
      %p82 = scmp.ne.s32.totalorder %s68, %s69
      %p83 = scmp.eq.s32.totalorder %s21, 1
      %p84 = por %p82, %p83
      %p86 = scmp.ne.s32.totalorder %s69, %s85
      %p87 = scmp.eq.s32.totalorder %s21, 0
      %p88 = por %p86, %p87
      %s89 = ssub.s32 %s23, %s30
      %s90 = ssub.s32 %s22, %s34
      %s91 = sor.u32 %s89, %s90
      %p92 = scmp.eq.s32.totalorder %s91, 0
      %s94 = sadd.s32 %s93, 1
      %s95 = scalar_select %p92, %s93, %s94
      %p98 = pneg %p92
      %p99 = scmp.eq.s32.totalorder %s15, 1
      %p100 = por %p98, %p99
      %p101 = scmp.ne.s32.totalorder %s93, %s96
      %p102 = scmp.eq.s32.totalorder %s15, 0
      %p103 = por %p101, %p102
      %p104 = scmp.ne.s32.totalorder %s93, %s96
      %p105 = scmp.eq.s32.totalorder %s20, 1
      %p106 = por %p104, %p105
      %p107 = scmp.ne.s32.totalorder %s96, %s97
      %p108 = scmp.eq.s32.totalorder %s20, 0
      %p109 = por %p107, %p108
      %p110 = scmp.ne.s32.totalorder %s96, %s97
      %p111 = scmp.eq.s32.totalorder %s21, 1
      %p112 = por %p110, %p111
      %p114 = scmp.ne.s32.totalorder %s97, %s113
      %p115 = scmp.eq.s32.totalorder %s21, 0
      %p116 = por %p114, %p115
      %p117 = scmp.le.s32.totalorder 1, %s15
      %p118 = scmp.lt.s32.totalorder %s15, 3
      %p119 = pnand %p117, %p118
      %p120 = pneg %p119
      // Predicated region
      $region9: #{tpu_custom_call.1} parent=5 // pred_check
        _
      $region10: #{tpu_custom_call.1} parent=5 // pred_check_branch
        %122 = sbr.rel (%p119) target = $region12
      $region11: #{tpu_custom_call.1} parent=5 // pred_region
        %s123 = ssub.s32 %s15, 1
        // Predicated region
        $region13: #{tpu_custom_call.1} parent=11 // pred_check
          %p124 = pneg %p81
        $region14: #{tpu_custom_call.1} parent=11 // pred_check_branch
          %126 = sbr.rel (%p124) target = $region16
        $region15: #{tpu_custom_call.1} parent=11 // pred_region
          %s128 = ssub.s32 128, 128
          %129 = vsyncadd [#allocation7], %s128
          %s130 = smul.addr %s24, 128
          %s131 = scalar_lea.hbm %s1, %s130
          %s133 = sshll.u32 [#allocation6], 4
          %s134 = int_to_ptr.vmem [resolvable:$true] %s133
          %136 = dma.hbm_to_vmem [thread:$0]  %s131, 128, %s134, [#allocation7]
        $region16: #{tpu_custom_call.1} parent=11 // pred_fallthru
          _
      $region12: #{tpu_custom_call.1} parent=5 // pred_fallthru
        _
      %p137 = scmp.lt.s32.totalorder %s15, 2
      // Predicated region
      $region17: #{tpu_custom_call.1} parent=5 // pred_check
        %p138 = pneg %p137
      $region18: #{tpu_custom_call.1} parent=5 // pred_check_branch
        %140 = sbr.rel (%p138) target = $region20
      $region19: #{tpu_custom_call.1} parent=5 // pred_region
        // Predicated region
        $region21: #{tpu_custom_call.1} parent=19 // pred_check
          %p141 = pneg %p49
        $region22: #{tpu_custom_call.1} parent=19 // pred_check_branch
          %143 = sbr.rel (%p141) target = $region24
        $region23: #{tpu_custom_call.1} parent=19 // pred_region
          %s144 = sand.u32 %s39, 1
          %s145 = scalar_lea.sflag [#allocation4], %s144
          %s146 = sand.u32 %s39, 1
          %s147 = smul.addr %s146, 4
          %s148 = scalar_lea.vmem [#allocation3], %s147
          %s150 = ssub.s32 64, 64
          %151 = vsyncadd %s145, %s150
          %s152 = sadd.s32 %s22, %s23
          %s153 = smul.addr %s152, 64
          %s154 = scalar_lea.hbm %s0, %s153
          %s156 = sshll.u32 %s148, 4
          %s157 = int_to_ptr.vmem [resolvable:$true] %s156
          %159 = dma.hbm_to_vmem [thread:$0]  %s154, 64, %s157, %s145
        $region24: #{tpu_custom_call.1} parent=19 // pred_fallthru
          _
      $region20: #{tpu_custom_call.1} parent=5 // pred_fallthru
        _
      %p160 = scmp.le.s32.totalorder 1, %s15
      %p161 = scmp.lt.s32.totalorder %s15, 3
      %p162 = pnand %p160, %p161
      %p163 = pneg %p162
      // Predicated region
      $region25: #{tpu_custom_call.1} parent=5 // pred_check
        _
      $region26: #{tpu_custom_call.1} parent=5 // pred_check_branch
        %165 = sbr.rel (%p162) target = $region28
      $region27: #{tpu_custom_call.1} parent=5 // pred_region
        %s166 = ssub.s32 %s15, 1
        %s167 = sand.u32 %s42, 1
        %s168 = scalar_lea.sflag [#allocation4], %s167
        %s169 = sand.u32 %s42, 1
        %s170 = smul.addr %s169, 4
        %s171 = scalar_lea.vmem [#allocation3], %s170
        // Predicated region
        $region29: #{tpu_custom_call.1} parent=27 // pred_check
          %p172 = pneg %p55
        $region30: #{tpu_custom_call.1} parent=27 // pred_check_branch
          %174 = sbr.rel (%p172) target = $region32
        $region31: #{tpu_custom_call.1} parent=27 // pred_region
          %175 = dma.done %s168, 64
        $region32: #{tpu_custom_call.1} parent=27 // pred_fallthru
          _
        // Predicated region
        $region33: #{tpu_custom_call.1} parent=27 // pred_check
          %p176 = pneg %p81
        $region34: #{tpu_custom_call.1} parent=27 // pred_check_branch
          %178 = sbr.rel (%p176) target = $region36
        $region35: #{tpu_custom_call.1} parent=27 // pred_region
          %179 = dma.done [#allocation7], 128
        $region36: #{tpu_custom_call.1} parent=27 // pred_fallthru
          _
        %s180 = sand.u32 %s42, 1
        %s181 = scalar_lea.sflag [#allocation4], %s180
        %s182 = sand.u32 %s42, 1
        %s183 = smul.addr %s182, 4
        %s184 = scalar_lea.vmem [#allocation3], %s183
        %p185 = pneg %p55
        %p186 = pneg %p52
        %p187 = pneg %p81
        %p188 = pneg %p78
        %p189 = pneg %p109
        %p190 = pneg %p106
        %s191 = sand.u32 %s96, 1
        %s192 = scalar_lea.sflag [#allocation5], %s191
        %s193 = sand.u32 %s96, 1
        %s194 = smul.addr %s193, 8
        %s195 = scalar_lea.vmem [#allocation8], %s194
        %vm196 = vcmask 3072
        %197 = vst.msk [vmem:[#allocation2] sm:$0xf] %vm196, 0.0
        %vm198 = vcmask 1043592
        %vm199 = vcmask 15364
        %vm200 = vmor %vm199, %vm198
        %201 = vst.msk [vmem:[#allocation2] sm:$0xff] %vm200, 0.0
        %v202 = vld [vmem:[%s171] sm:$0xf]
        %204 = vrot.lane.b32.xlu0 %v202, 1
        %v205 = vpop.permute.xlu0 %204
        %vm207 = vcmask 134152
        %208 = vst.msk [vmem:[#allocation2] sm:$0xf] %vm207, %v205
        %v209 = vld [vmem:[#allocation2] sm:$0xf]
        %v210 = vld [vmem:[#allocation2] sm:$0xff]
        %v212 = vcombine.low %v210, %v210
        %213 = vrot.lane.b32.xlu0 %v212, 127
        %v214 = vpop.permute.xlu0 %213
        %215 = vrot.lane.b32.xlu0 %v210, 127
        %v216 = vpop.permute.xlu0 %215
        %vm217 = vcmask 1039360
        %v218 = vsel %vm217, %v214, %v216
        %v220 = vcombine.high %v210, %v210
        %221 = vrot.lane.b32.xlu0 %v210, 126
        %v222 = vpop.permute.xlu0 %221
        %223 = vrot.lane.b32.xlu0 %v220, 126
        %v224 = vpop.permute.xlu0 %223
        %vm225 = vcmask 1031168
        %v226 = vsel %vm225, %v222, %v224
        %vm227 = vcmask 1043456
        %v228 = vsel %vm227, %v209, %v218
        %v229 = vld [vmem:[#allocation6] sm:$0xff]
        %vm230 = vcmask 97280
        %v232 = vsel %vm230, %v229, 0
        %v234 = vsel %vm227, %v226, 0
        %236 = vmatprep.subr.mxu0 0.0
        %237 = vmatpush1.msra.mxu0 0.0
        %238 = vmatprep.subr.mxu0 0.0
        %239 = vmatpush1.msra.mxu0 0.0
        %240 = vmatprep.subr.mxu0 0.0
        %241 = vmatpush1.msra.mxu0 0.0
        %242 = vmatprep.subr.mxu0 0.0
        %243 = vmatpush1.msra.mxu0 0.0
        %244 = vmatprep.subr.mxu0 0.0
        %245 = vmatpush1.msra.mxu0 0.0
        %246 = vmatprep.subr.mxu0 0.0
        %247 = vmatpush1.msra.mxu0 0.0
        %248 = vmatprep.subr.mxu0 0.0
        %249 = vmatpush1.msra.mxu0 0.0
        %250 = vmatprep.subr.mxu0 0.0
        %251 = vmatpush1.msra.mxu0 0.0
        %252 = vmatprep.subr.mxu0 0.0
        %253 = vmatpush1.msra.mxu0 0.0
        %254 = vmatprep.subr.mxu0 0.0
        %255 = vmatpush1.msra.mxu0 0.0
        %256 = vmatprep.subr.mxu0 0.0
        %257 = vmatpush1.msra.mxu0 0.0
        %258 = vmatprep.subr.mxu0 0.0
        %259 = vmatpush1.msra.mxu0 0.0
        %260 = vmatprep.subr.mxu0 0.0
        %261 = vmatpush1.msra.mxu0 0.0
        %262 = vmatprep.subr.mxu0 0.0
        %263 = vmatpush1.msra.mxu0 0.0
        %264 = vmatprep.subr.mxu0 0.0
        %v265 = vand.u32 %v234, 4294901760
        %266 = vmatpush1.msra.mxu0 %v265
        %267 = vmatprep.subr.mxu0 0.0
        %v268 = vand.u32 %v228, 4294901760
        %269 = vmatpush1.msra.mxu0 %v268
        %270 = vmatprep.subr.mxu0 0.0
        %271 = vmatpush2.msra.mxu0 0.0
        %272 = vmatprep.subr.mxu0 0.0
        %273 = vmatpush2.msra.mxu0 0.0
        %274 = vmatprep.subr.mxu0 0.0
        %275 = vmatpush2.msra.mxu0 0.0
        %276 = vmatprep.subr.mxu0 0.0
        %277 = vmatpush2.msra.mxu0 0.0
        %278 = vmatprep.subr.mxu0 0.0
        %279 = vmatpush2.msra.mxu0 0.0
        %280 = vmatprep.subr.mxu0 0.0
        %281 = vmatpush2.msra.mxu0 0.0
        %282 = vmatprep.subr.mxu0 0.0
        %283 = vmatpush2.msra.mxu0 0.0
        %284 = vmatprep.subr.mxu0 0.0
        %285 = vmatpush2.msra.mxu0 0.0
        %286 = vmatprep.subr.mxu0 0.0
        %287 = vmatpush2.msra.mxu0 0.0
        %288 = vmatprep.subr.mxu0 0.0
        %289 = vmatpush2.msra.mxu0 0.0
        %290 = vmatprep.subr.mxu0 0.0
        %291 = vmatpush2.msra.mxu0 0.0
        %292 = vmatprep.subr.mxu0 0.0
        %293 = vmatpush2.msra.mxu0 0.0
        %294 = vmatprep.subr.mxu0 0.0
        %295 = vmatpush2.msra.mxu0 0.0
        %296 = vmatprep.subr.mxu0 0.0
        %297 = vmatpush2.msra.mxu0 0.0
        %298 = vmatprep.subr.mxu0 0.0
        %299 = vmatpush2.msra.mxu0 0.0
        %300 = vmatprep.subr.mxu0 0.0
        %301 = vmatpush2.msra.mxu0 0.0
        %302 = vmatprep.mubr.f32.mxu0 0.0
        %v303 = vand.u32 %v232, 4294901760
        %v304 = vsub.f32 %v232, %v303
        %v305 = vand.u32 %v304, 4294901760
        %v306 = vsub.f32 %v304, %v305
        %v307 = vand.u32 %v306, 4294901760
        %308 = vmatmul.mubr.f32.gmra.mxu0 %v307
        %v309 = vpop.f32.mrf.mxu0
        %v310 = vadd.f32 0.0, %v309
        %v311 = vpop.f32.mrf.mxu0
        %312 = vdwg.mxu0
        %313 = vmatprep.subr.mxu0 0.0
        %314 = vmatpush1.msra.mxu0 0.0
        %315 = vmatprep.subr.mxu0 0.0
        %316 = vmatpush1.msra.mxu0 0.0
        %317 = vmatprep.subr.mxu0 0.0
        %318 = vmatpush1.msra.mxu0 0.0
        %319 = vmatprep.subr.mxu0 0.0
        %320 = vmatpush1.msra.mxu0 0.0
        %321 = vmatprep.subr.mxu0 0.0
        %322 = vmatpush1.msra.mxu0 0.0
        %323 = vmatprep.subr.mxu0 0.0
        %324 = vmatpush1.msra.mxu0 0.0
        %325 = vmatprep.subr.mxu0 0.0
        %326 = vmatpush1.msra.mxu0 0.0
        %327 = vmatprep.subr.mxu0 0.0
        %328 = vmatpush1.msra.mxu0 0.0
        %329 = vmatprep.subr.mxu0 0.0
        %330 = vmatpush1.msra.mxu0 0.0
        %331 = vmatprep.subr.mxu0 0.0
        %332 = vmatpush1.msra.mxu0 0.0
        %333 = vmatprep.subr.mxu0 0.0
        %334 = vmatpush1.msra.mxu0 0.0
        %335 = vmatprep.subr.mxu0 0.0
        %336 = vmatpush1.msra.mxu0 0.0
        %337 = vmatprep.subr.mxu0 0.0
        %338 = vmatpush1.msra.mxu0 0.0
        %339 = vmatprep.subr.mxu0 0.0
        %340 = vmatpush1.msra.mxu0 0.0
        %341 = vmatprep.subr.mxu0 0.0
        %v342 = vand.u32 %v234, 4294901760
        %v343 = vsub.f32 %v234, %v342
        %v344 = vand.u32 %v343, 4294901760
        %v345 = vsub.f32 %v343, %v344
        %v346 = vand.u32 %v345, 4294901760
        %347 = vmatpush1.msra.mxu0 %v346
        %348 = vmatprep.subr.mxu0 0.0
        %v349 = vand.u32 %v228, 4294901760
        %v350 = vsub.f32 %v228, %v349
        %v351 = vand.u32 %v350, 4294901760
        %v352 = vsub.f32 %v350, %v351
        %v353 = vand.u32 %v352, 4294901760
        %354 = vmatpush1.msra.mxu0 %v353
        %355 = vmatprep.subr.mxu0 0.0
        %356 = vmatpush2.msra.mxu0 0.0
        %357 = vmatprep.subr.mxu0 0.0
        %358 = vmatpush2.msra.mxu0 0.0
        %359 = vmatprep.subr.mxu0 0.0
        %360 = vmatpush2.msra.mxu0 0.0
        %361 = vmatprep.subr.mxu0 0.0
        %362 = vmatpush2.msra.mxu0 0.0
        %363 = vmatprep.subr.mxu0 0.0
        %364 = vmatpush2.msra.mxu0 0.0
        %365 = vmatprep.subr.mxu0 0.0
        %366 = vmatpush2.msra.mxu0 0.0
        %367 = vmatprep.subr.mxu0 0.0
        %368 = vmatpush2.msra.mxu0 0.0
        %369 = vmatprep.subr.mxu0 0.0
        %370 = vmatpush2.msra.mxu0 0.0
        %371 = vmatprep.subr.mxu0 0.0
        %372 = vmatpush2.msra.mxu0 0.0
        %373 = vmatprep.subr.mxu0 0.0
        %374 = vmatpush2.msra.mxu0 0.0
        %375 = vmatprep.subr.mxu0 0.0
        %376 = vmatpush2.msra.mxu0 0.0
        %377 = vmatprep.subr.mxu0 0.0
        %378 = vmatpush2.msra.mxu0 0.0
        %379 = vmatprep.subr.mxu0 0.0
        %380 = vmatpush2.msra.mxu0 0.0
        %381 = vmatprep.subr.mxu0 0.0
        %382 = vmatpush2.msra.mxu0 0.0
        %383 = vmatprep.subr.mxu0 0.0
        %384 = vmatpush2.msra.mxu0 0.0
        %385 = vmatprep.subr.mxu0 0.0
        %386 = vmatpush2.msra.mxu0 0.0
        %387 = vmatprep.mubr.f32.mxu0 0.0
        %v388 = vand.u32 %v232, 4294901760
        %389 = vmatmul.mubr.f32.gmra.mxu0 %v388
        %v390 = vpop.f32.mrf.mxu0
        %v391 = vadd.f32 %v310, %v390
        %v392 = vpop.f32.mrf.mxu0
        %393 = vdwg.mxu0
        %394 = vmatprep.subr.mxu0 0.0
        %395 = vmatpush1.msra.mxu0 0.0
        %396 = vmatprep.subr.mxu0 0.0
        %397 = vmatpush1.msra.mxu0 0.0
        %398 = vmatprep.subr.mxu0 0.0
        %399 = vmatpush1.msra.mxu0 0.0
        %400 = vmatprep.subr.mxu0 0.0
        %401 = vmatpush1.msra.mxu0 0.0
        %402 = vmatprep.subr.mxu0 0.0
        %403 = vmatpush1.msra.mxu0 0.0
        %404 = vmatprep.subr.mxu0 0.0
        %405 = vmatpush1.msra.mxu0 0.0
        %406 = vmatprep.subr.mxu0 0.0
        %407 = vmatpush1.msra.mxu0 0.0
        %408 = vmatprep.subr.mxu0 0.0
        %409 = vmatpush1.msra.mxu0 0.0
        %410 = vmatprep.subr.mxu0 0.0
        %411 = vmatpush1.msra.mxu0 0.0
        %412 = vmatprep.subr.mxu0 0.0
        %413 = vmatpush1.msra.mxu0 0.0
        %414 = vmatprep.subr.mxu0 0.0
        %415 = vmatpush1.msra.mxu0 0.0
        %416 = vmatprep.subr.mxu0 0.0
        %417 = vmatpush1.msra.mxu0 0.0
        %418 = vmatprep.subr.mxu0 0.0
        %419 = vmatpush1.msra.mxu0 0.0
        %420 = vmatprep.subr.mxu0 0.0
        %421 = vmatpush1.msra.mxu0 0.0
        %422 = vmatprep.subr.mxu0 0.0
        %v423 = vand.u32 %v234, 4294901760
        %v424 = vsub.f32 %v234, %v423
        %425 = vmatpush1.msra.mxu0 %v424
        %426 = vmatprep.subr.mxu0 0.0
        %v427 = vand.u32 %v228, 4294901760
        %v428 = vsub.f32 %v228, %v427
        %429 = vmatpush1.msra.mxu0 %v428
        %430 = vmatprep.subr.mxu0 0.0
        %431 = vmatpush2.msra.mxu0 0.0
        %432 = vmatprep.subr.mxu0 0.0
        %433 = vmatpush2.msra.mxu0 0.0
        %434 = vmatprep.subr.mxu0 0.0
        %435 = vmatpush2.msra.mxu0 0.0
        %436 = vmatprep.subr.mxu0 0.0
        %437 = vmatpush2.msra.mxu0 0.0
        %438 = vmatprep.subr.mxu0 0.0
        %439 = vmatpush2.msra.mxu0 0.0
        %440 = vmatprep.subr.mxu0 0.0
        %441 = vmatpush2.msra.mxu0 0.0
        %442 = vmatprep.subr.mxu0 0.0
        %443 = vmatpush2.msra.mxu0 0.0
        %444 = vmatprep.subr.mxu0 0.0
        %445 = vmatpush2.msra.mxu0 0.0
        %446 = vmatprep.subr.mxu0 0.0
        %447 = vmatpush2.msra.mxu0 0.0
        %448 = vmatprep.subr.mxu0 0.0
        %449 = vmatpush2.msra.mxu0 0.0
        %450 = vmatprep.subr.mxu0 0.0
        %451 = vmatpush2.msra.mxu0 0.0
        %452 = vmatprep.subr.mxu0 0.0
        %453 = vmatpush2.msra.mxu0 0.0
        %454 = vmatprep.subr.mxu0 0.0
        %455 = vmatpush2.msra.mxu0 0.0
        %456 = vmatprep.subr.mxu0 0.0
        %457 = vmatpush2.msra.mxu0 0.0
        %458 = vmatprep.subr.mxu0 0.0
        %459 = vmatpush2.msra.mxu0 0.0
        %460 = vmatprep.subr.mxu0 0.0
        %461 = vmatpush2.msra.mxu0 0.0
        %462 = vmatprep.mubr.f32.mxu0 0.0
        %v463 = vand.u32 %v232, 4294901760
        %v464 = vsub.f32 %v232, %v463
        %465 = vmatmul.mubr.f32.gmra.mxu0 %v464
        %v466 = vpop.f32.mrf.mxu0
        %v467 = vadd.f32 %v391, %v466
        %v468 = vpop.f32.mrf.mxu0
        %469 = vdwg.mxu0
        %470 = vmatprep.subr.mxu0 0.0
        %471 = vmatpush1.msra.mxu0 0.0
        %472 = vmatprep.subr.mxu0 0.0
        %473 = vmatpush1.msra.mxu0 0.0
        %474 = vmatprep.subr.mxu0 0.0
        %475 = vmatpush1.msra.mxu0 0.0
        %476 = vmatprep.subr.mxu0 0.0
        %477 = vmatpush1.msra.mxu0 0.0
        %478 = vmatprep.subr.mxu0 0.0
        %479 = vmatpush1.msra.mxu0 0.0
        %480 = vmatprep.subr.mxu0 0.0
        %481 = vmatpush1.msra.mxu0 0.0
        %482 = vmatprep.subr.mxu0 0.0
        %483 = vmatpush1.msra.mxu0 0.0
        %484 = vmatprep.subr.mxu0 0.0
        %485 = vmatpush1.msra.mxu0 0.0
        %486 = vmatprep.subr.mxu0 0.0
        %487 = vmatpush1.msra.mxu0 0.0
        %488 = vmatprep.subr.mxu0 0.0
        %489 = vmatpush1.msra.mxu0 0.0
        %490 = vmatprep.subr.mxu0 0.0
        %491 = vmatpush1.msra.mxu0 0.0
        %492 = vmatprep.subr.mxu0 0.0
        %493 = vmatpush1.msra.mxu0 0.0
        %494 = vmatprep.subr.mxu0 0.0
        %495 = vmatpush1.msra.mxu0 0.0
        %496 = vmatprep.subr.mxu0 0.0
        %497 = vmatpush1.msra.mxu0 0.0
        %498 = vmatprep.subr.mxu0 0.0
        %v499 = vand.u32 %v234, 4294901760
        %500 = vmatpush1.msra.mxu0 %v499
        %501 = vmatprep.subr.mxu0 0.0
        %v502 = vand.u32 %v228, 4294901760
        %503 = vmatpush1.msra.mxu0 %v502
        %504 = vmatprep.subr.mxu0 0.0
        %505 = vmatpush2.msra.mxu0 0.0
        %506 = vmatprep.subr.mxu0 0.0
        %507 = vmatpush2.msra.mxu0 0.0
        %508 = vmatprep.subr.mxu0 0.0
        %509 = vmatpush2.msra.mxu0 0.0
        %510 = vmatprep.subr.mxu0 0.0
        %511 = vmatpush2.msra.mxu0 0.0
        %512 = vmatprep.subr.mxu0 0.0
        %513 = vmatpush2.msra.mxu0 0.0
        %514 = vmatprep.subr.mxu0 0.0
        %515 = vmatpush2.msra.mxu0 0.0
        %516 = vmatprep.subr.mxu0 0.0
        %517 = vmatpush2.msra.mxu0 0.0
        %518 = vmatprep.subr.mxu0 0.0
        %519 = vmatpush2.msra.mxu0 0.0
        %520 = vmatprep.subr.mxu0 0.0
        %521 = vmatpush2.msra.mxu0 0.0
        %522 = vmatprep.subr.mxu0 0.0
        %523 = vmatpush2.msra.mxu0 0.0
        %524 = vmatprep.subr.mxu0 0.0
        %525 = vmatpush2.msra.mxu0 0.0
        %526 = vmatprep.subr.mxu0 0.0
        %527 = vmatpush2.msra.mxu0 0.0
        %528 = vmatprep.subr.mxu0 0.0
        %529 = vmatpush2.msra.mxu0 0.0
        %530 = vmatprep.subr.mxu0 0.0
        %531 = vmatpush2.msra.mxu0 0.0
        %532 = vmatprep.subr.mxu0 0.0
        %533 = vmatpush2.msra.mxu0 0.0
        %534 = vmatprep.subr.mxu0 0.0
        %535 = vmatpush2.msra.mxu0 0.0
        %536 = vmatprep.mubr.f32.mxu0 0.0
        %v537 = vand.u32 %v232, 4294901760
        %v538 = vsub.f32 %v232, %v537
        %v539 = vand.u32 %v538, 4294901760
        %540 = vmatmul.mubr.f32.gmra.mxu0 %v539
        %v541 = vpop.f32.mrf.mxu0
        %v542 = vadd.f32 %v467, %v541
        %v543 = vpop.f32.mrf.mxu0
        %544 = vdwg.mxu0
        %545 = vmatprep.subr.mxu0 0.0
        %546 = vmatpush1.msra.mxu0 0.0
        %547 = vmatprep.subr.mxu0 0.0
        %548 = vmatpush1.msra.mxu0 0.0
        %549 = vmatprep.subr.mxu0 0.0
        %550 = vmatpush1.msra.mxu0 0.0
        %551 = vmatprep.subr.mxu0 0.0
        %552 = vmatpush1.msra.mxu0 0.0
        %553 = vmatprep.subr.mxu0 0.0
        %554 = vmatpush1.msra.mxu0 0.0
        %555 = vmatprep.subr.mxu0 0.0
        %556 = vmatpush1.msra.mxu0 0.0
        %557 = vmatprep.subr.mxu0 0.0
        %558 = vmatpush1.msra.mxu0 0.0
        %559 = vmatprep.subr.mxu0 0.0
        %560 = vmatpush1.msra.mxu0 0.0
        %561 = vmatprep.subr.mxu0 0.0
        %562 = vmatpush1.msra.mxu0 0.0
        %563 = vmatprep.subr.mxu0 0.0
        %564 = vmatpush1.msra.mxu0 0.0
        %565 = vmatprep.subr.mxu0 0.0
        %566 = vmatpush1.msra.mxu0 0.0
        %567 = vmatprep.subr.mxu0 0.0
        %568 = vmatpush1.msra.mxu0 0.0
        %569 = vmatprep.subr.mxu0 0.0
        %570 = vmatpush1.msra.mxu0 0.0
        %571 = vmatprep.subr.mxu0 0.0
        %572 = vmatpush1.msra.mxu0 0.0
        %573 = vmatprep.subr.mxu0 0.0
        %v574 = vand.u32 %v234, 4294901760
        %v575 = vsub.f32 %v234, %v574
        %v576 = vand.u32 %v575, 4294901760
        %577 = vmatpush1.msra.mxu0 %v576
        %578 = vmatprep.subr.mxu0 0.0
        %v579 = vand.u32 %v228, 4294901760
        %v580 = vsub.f32 %v228, %v579
        %v581 = vand.u32 %v580, 4294901760
        %582 = vmatpush1.msra.mxu0 %v581
        %583 = vmatprep.subr.mxu0 0.0
        %584 = vmatpush2.msra.mxu0 0.0
        %585 = vmatprep.subr.mxu0 0.0
        %586 = vmatpush2.msra.mxu0 0.0
        %587 = vmatprep.subr.mxu0 0.0
        %588 = vmatpush2.msra.mxu0 0.0
        %589 = vmatprep.subr.mxu0 0.0
        %590 = vmatpush2.msra.mxu0 0.0
        %591 = vmatprep.subr.mxu0 0.0
        %592 = vmatpush2.msra.mxu0 0.0
        %593 = vmatprep.subr.mxu0 0.0
        %594 = vmatpush2.msra.mxu0 0.0
        %595 = vmatprep.subr.mxu0 0.0
        %596 = vmatpush2.msra.mxu0 0.0
        %597 = vmatprep.subr.mxu0 0.0
        %598 = vmatpush2.msra.mxu0 0.0
        %599 = vmatprep.subr.mxu0 0.0
        %600 = vmatpush2.msra.mxu0 0.0
        %601 = vmatprep.subr.mxu0 0.0
        %602 = vmatpush2.msra.mxu0 0.0
        %603 = vmatprep.subr.mxu0 0.0
        %604 = vmatpush2.msra.mxu0 0.0
        %605 = vmatprep.subr.mxu0 0.0
        %606 = vmatpush2.msra.mxu0 0.0
        %607 = vmatprep.subr.mxu0 0.0
        %608 = vmatpush2.msra.mxu0 0.0
        %609 = vmatprep.subr.mxu0 0.0
        %610 = vmatpush2.msra.mxu0 0.0
        %611 = vmatprep.subr.mxu0 0.0
        %612 = vmatpush2.msra.mxu0 0.0
        %613 = vmatprep.subr.mxu0 0.0
        %614 = vmatpush2.msra.mxu0 0.0
        %615 = vmatprep.mubr.f32.mxu0 0.0
        %v616 = vand.u32 %v232, 4294901760
        %617 = vmatmul.mubr.f32.gmra.mxu0 %v616
        %v618 = vpop.f32.mrf.mxu0
        %v619 = vadd.f32 %v542, %v618
        %v620 = vpop.f32.mrf.mxu0
        %621 = vdwg.mxu0
        %622 = vmatprep.subr.mxu0 0.0
        %623 = vmatpush1.msra.mxu0 0.0
        %624 = vmatprep.subr.mxu0 0.0
        %625 = vmatpush1.msra.mxu0 0.0
        %626 = vmatprep.subr.mxu0 0.0
        %627 = vmatpush1.msra.mxu0 0.0
        %628 = vmatprep.subr.mxu0 0.0
        %629 = vmatpush1.msra.mxu0 0.0
        %630 = vmatprep.subr.mxu0 0.0
        %631 = vmatpush1.msra.mxu0 0.0
        %632 = vmatprep.subr.mxu0 0.0
        %633 = vmatpush1.msra.mxu0 0.0
        %634 = vmatprep.subr.mxu0 0.0
        %635 = vmatpush1.msra.mxu0 0.0
        %636 = vmatprep.subr.mxu0 0.0
        %637 = vmatpush1.msra.mxu0 0.0
        %638 = vmatprep.subr.mxu0 0.0
        %639 = vmatpush1.msra.mxu0 0.0
        %640 = vmatprep.subr.mxu0 0.0
        %641 = vmatpush1.msra.mxu0 0.0
        %642 = vmatprep.subr.mxu0 0.0
        %643 = vmatpush1.msra.mxu0 0.0
        %644 = vmatprep.subr.mxu0 0.0
        %645 = vmatpush1.msra.mxu0 0.0
        %646 = vmatprep.subr.mxu0 0.0
        %647 = vmatpush1.msra.mxu0 0.0
        %648 = vmatprep.subr.mxu0 0.0
        %649 = vmatpush1.msra.mxu0 0.0
        %650 = vmatprep.subr.mxu0 0.0
        %v651 = vand.u32 %v234, 4294901760
        %652 = vmatpush1.msra.mxu0 %v651
        %653 = vmatprep.subr.mxu0 0.0
        %v654 = vand.u32 %v228, 4294901760
        %655 = vmatpush1.msra.mxu0 %v654
        %656 = vmatprep.subr.mxu0 0.0
        %657 = vmatpush2.msra.mxu0 0.0
        %658 = vmatprep.subr.mxu0 0.0
        %659 = vmatpush2.msra.mxu0 0.0
        %660 = vmatprep.subr.mxu0 0.0
        %661 = vmatpush2.msra.mxu0 0.0
        %662 = vmatprep.subr.mxu0 0.0
        %663 = vmatpush2.msra.mxu0 0.0
        %664 = vmatprep.subr.mxu0 0.0
        %665 = vmatpush2.msra.mxu0 0.0
        %666 = vmatprep.subr.mxu0 0.0
        %667 = vmatpush2.msra.mxu0 0.0
        %668 = vmatprep.subr.mxu0 0.0
        %669 = vmatpush2.msra.mxu0 0.0
        %670 = vmatprep.subr.mxu0 0.0
        %671 = vmatpush2.msra.mxu0 0.0
        %672 = vmatprep.subr.mxu0 0.0
        %673 = vmatpush2.msra.mxu0 0.0
        %674 = vmatprep.subr.mxu0 0.0
        %675 = vmatpush2.msra.mxu0 0.0
        %676 = vmatprep.subr.mxu0 0.0
        %677 = vmatpush2.msra.mxu0 0.0
        %678 = vmatprep.subr.mxu0 0.0
        %679 = vmatpush2.msra.mxu0 0.0
        %680 = vmatprep.subr.mxu0 0.0
        %681 = vmatpush2.msra.mxu0 0.0
        %682 = vmatprep.subr.mxu0 0.0
        %683 = vmatpush2.msra.mxu0 0.0
        %684 = vmatprep.subr.mxu0 0.0
        %685 = vmatpush2.msra.mxu0 0.0
        %686 = vmatprep.subr.mxu0 0.0
        %687 = vmatpush2.msra.mxu0 0.0
        %688 = vmatprep.mubr.f32.mxu0 0.0
        %v689 = vand.u32 %v232, 4294901760
        %690 = vmatmul.mubr.f32.gmra.mxu0 %v689
        %v691 = vpop.f32.mrf.mxu0
        %v692 = vadd.f32 %v619, %v691
        %v693 = vpop.f32.mrf.mxu0
        %694 = vdwg.mxu0
        %695 = vst [vmem:[%s195] sm:$0xff] %v692
        %s696 = sand.u32 %s96, 1
        %s697 = scalar_lea.sflag [#allocation5], %s696
        %s698 = sand.u32 %s96, 1
        %s699 = smul.addr %s698, 8
        %s700 = scalar_lea.vmem [#allocation8], %s699
        // Predicated region
        $region37: #{tpu_custom_call.1} parent=27 // pred_check
          %p701 = pneg %p106
        $region38: #{tpu_custom_call.1} parent=27 // pred_check_branch
          %703 = sbr.rel (%p701) target = $region40
        $region39: #{tpu_custom_call.1} parent=27 // pred_region
          %s705 = ssub.s32 128, 128
          %706 = vsyncadd %s697, %s705
          %s707 = sadd.s32 %s24, %s25
          %s708 = smul.addr %s707, 128
          %s709 = scalar_lea.hbm %s2, %s708
          %s711 = sshll.u32 %s700, 4
          %s712 = int_to_ptr.vmem [resolvable:$true] %s711
          %714 = dma.vmem_to_hbm [thread:$0]  %s712, 128, %s709, %s697
        $region40: #{tpu_custom_call.1} parent=27 // pred_fallthru
          _
      $region28: #{tpu_custom_call.1} parent=5 // pred_fallthru
        _
      %p715 = scmp.le.s32.totalorder 2, %s15
      // Predicated region
      $region41: #{tpu_custom_call.1} parent=5 // pred_check
        %p716 = pneg %p715
      $region42: #{tpu_custom_call.1} parent=5 // pred_check_branch
        %718 = sbr.rel (%p716) target = $region44
      $region43: #{tpu_custom_call.1} parent=5 // pred_region
        %s719 = ssub.s32 %s15, 2
        // Predicated region
        $region45: #{tpu_custom_call.1} parent=43 // pred_check
          %p720 = pneg %p112
        $region46: #{tpu_custom_call.1} parent=43 // pred_check_branch
          %722 = sbr.rel (%p720) target = $region48
        $region47: #{tpu_custom_call.1} parent=43 // pred_region
          %s723 = sand.u32 %s97, 1
          %s724 = scalar_lea.sflag [#allocation5], %s723
          %s725 = sand.u32 %s97, 1
          %s726 = smul.addr %s725, 8
          %s727 = scalar_lea.vmem [#allocation8], %s726
          %728 = dma.done %s724, 128
        $region48: #{tpu_custom_call.1} parent=43 // pred_fallthru
          _
      $region44: #{tpu_custom_call.1} parent=5 // pred_fallthru
        _
    $region6: #{tpu_custom_call.1} parent=1 // loop_footer
      %s19 = sadd.s32 1, %s15
    $region7: #{tpu_custom_call.1} parent=1 // loop_footer_branch
      %14 = sbr.rel target = $region3
    $region8: #{tpu_custom_call.1} parent=1 // loop_exit
      _
    %729 = vsyncpa [#allocation4], 1
    %s730 = scalar_lea.sflag [#allocation4], 1
    %731 = vsyncpa %s730, 1
    %732 = vsyncpa [#allocation7], 1
    %733 = vsyncpa [#allocation5], 1
    %s734 = scalar_lea.sflag [#allocation5], 1
    %735 = vsyncpa %s734, 1

</llo_original>
